<compile_context>
chip_gen: v7x
topology: tpu7x:2x2x1
jax: 0.10.0
libtpu: 0.0.40
codegen_flags: <defaults>
</compile_context>

<pallas_src>
import numpy as np
import jax
import jax.numpy as jnp
from jax import lax
from jax.experimental import pallas as pl
from jax.experimental.pallas import tpu as pltpu

# ------------------------- static model configuration -------------------------
INPUT_SIZE = 64           # params.input_size
CONV_CHANNELS = 4         # params.out_channels_list = [4]
CONV_K = 5                # params.kernel_sizes = [5]
POOL_STRIDE = 2           # params.strides = [2]
FC_SIZE = 32              # params.FC_size_list = [32]
MU_SIZE = 8               # params.embedding_size (before the 2x doubling in the VAE)
EMBED_OUT = 2 * MU_SIZE   # fc3 output = [mu | logvar]
DROPOUT_RATE = 0.0        # TODO(synk): dropout with p>0 (training) not implemented in-kernel
BATCH = 8                 # params.batch_size
LOSS_FNS = 1              # len(params.loss_fns)
BN_EPS = 1e-5
KLD_NORM = BATCH * INPUT_SIZE / LOSS_FNS

CONV_LEN = INPUT_SIZE                               # stride-1 conv with 'same' padding
POOL_LEN = (CONV_LEN - CONV_K) // POOL_STRIDE + 1   # 30
FC_IN = CONV_CHANNELS * POOL_LEN                    # 120 (flattened pooled features)
CL = CONV_CHANNELS * CONV_LEN                       # 256 (channel-major conv columns)
CLV = CL - (CONV_K - 1)                             # 252 valid stride-1 window starts


# ------------------------- host-side (trace-time) folding -------------------------
def fold_parameters(wconv, gamma1, beta1, w1, bias1, gamma2, beta2, w3, bias3):
    """Fold every static linear piece of the forward into matmul weights (done once on host)."""
    wconv = np.asarray(wconv, np.float32)
    gamma1 = np.asarray(gamma1, np.float32)
    beta1 = np.asarray(beta1, np.float32)
    w1 = np.asarray(w1, np.float32)
    bias1 = np.asarray(bias1, np.float32)
    gamma2 = np.asarray(gamma2, np.float32)
    beta2 = np.asarray(beta2, np.float32)
    w3 = np.asarray(w3, np.float32)
    bias3 = np.asarray(bias3, np.float32)

    pad = (CONV_K - 1) // 2
    # Conv1d (cross-correlation, zero padding) as a Toeplitz matrix:
    #   h[b, c*L + l] = sum_j wconv[c,0,j] * x[b, l + j - pad]
    wc = np.zeros((INPUT_SIZE, CL), np.float32)
    for c in range(CONV_CHANNELS):
        for l in range(CONV_LEN):
            for j in range(CONV_K):
                i = l + j - pad
                if 0 <= i < INPUT_SIZE:
                    wc[i, c * CONV_LEN + l] = wconv[c, 0, j]

    # 0/1 channel-indicator matrix for per-channel BatchNorm statistics (scaled in-kernel).
    chan = np.arange(CL) // CONV_LEN
    chan_ind = (chan[:, None] == chan[None, :]).astype(np.float32)

    # fc1 with the MaxPool stride-2 subsampling and the (C, Lp) channel-major flatten folded
    # into its rows: pooled value (c, p) lives at stride-1 window-max column c*L + 2p.
    w1_t = w1.T                                           # (C*Lp, FC)
    w1_eff = np.zeros((CLV, FC_SIZE), np.float32)
    for c in range(CONV_CHANNELS):
        for p in range(POOL_LEN):
            w1_eff[c * CONV_LEN + POOL_STRIDE * p, :] = w1_t[c * POOL_LEN + p, :]

    # BatchNorm1d(FC) affine folded into fc3: out = n @ (g2*W3^T) + (b2 @ W3^T + b3).
    w3_t = w3.T                                           # (FC, 2*MU)
    w3_eff = gamma2[:, None] * w3_t
    b3_eff = beta2 @ w3_t + bias3

    # Pack the small per-lane parameters into a single operand (one DMA instead of many).
    prm = np.zeros((4, CL), np.float32)
    prm[0, :] = np.repeat(gamma1, CONV_LEN)               # BN1 gamma broadcast per lane
    prm[1, :] = np.repeat(beta1, CONV_LEN)                # BN1 beta broadcast per lane
    prm[2, :FC_SIZE] = bias1                              # fc1 bias
    prm[3, :EMBED_OUT] = b3_eff                           # fc3 bias (with BN2 affine folded in)
    return wc, chan_ind, w1_eff, w3_eff, prm


# ------------------------------- Pallas kernel -------------------------------
def vae_encoder_kernel(x_ref, eps_ref, wc_ref, chan_ref, w1_ref, w3_ref, prm_ref,
                       y_ref, kld_ref):
    B = x_ref.shape[0]
    x = x_ref[...]                                                        # (B, L)

    # Conv1d (folded into a Toeplitz matmul); columns are channel-major (c*L + l).
    h = jnp.dot(x, wc_ref[...], preferred_element_type=jnp.float32)      # (B, C*L)

    # BatchNorm1d(C), training mode: one-pass batch stats per channel, broadcast back to
    # every lane of the channel with one small matmul against the 0/1 indicator.
    inv_n = 1.0 / (B * CONV_LEN)
    s1 = jnp.sum(h, axis=0, keepdims=True)                                # (1, C*L)
    s2 = jnp.sum(h * h, axis=0, keepdims=True)
    mean_b = jnp.dot(s1, chan_ref[...], preferred_element_type=jnp.float32) * inv_n
    ex2_b = jnp.dot(s2, chan_ref[...], preferred_element_type=jnp.float32) * inv_n
    var_b = ex2_b - mean_b * mean_b
    scale = prm_ref[0:1, :] * lax.rsqrt(var_b + BN_EPS)                   # gamma / sqrt(var+eps)
    shift = prm_ref[1:2, :] - mean_b * scale                              # beta - mean*scale
    h = jnp.maximum(h * scale + shift, 0.0)                               # BN1 affine + ReLU

    # MaxPool1d(k=5, stride=2): stride-1 window max via K wide shifted slices; the stride-2
    # subsampling + channel-major flatten are folded into w1_eff's rows.
    m = h[:, 0:CLV]
    for j in range(1, CONV_K):
        m = jnp.maximum(m, h[:, j:j + CLV])                               # (B, C*L - K + 1)

    # FullConnectedBlock: Linear -> ReLU -> (dropout p=0) -> BatchNorm1d(FC) (no residual,
    # since in_channels != out_channels). BN2 affine is folded into w3_eff / packed bias.
    z = jnp.dot(m, w1_ref[...], preferred_element_type=jnp.float32) + prm_ref[2:3, 0:FC_SIZE]
    z = jnp.maximum(z, 0.0)
    mu2 = jnp.mean(z, axis=0, keepdims=True)
    var2 = jnp.mean(z * z, axis=0, keepdims=True) - mu2 * mu2
    zn = (z - mu2) * lax.rsqrt(var2 + BN_EPS)

    # fc3 (EmbeddingNet.fc3; its unused self.norm is skipped, matching forward()).
    out = jnp.dot(zn, w3_ref[...], preferred_element_type=jnp.float32) + prm_ref[3:4, 0:EMBED_OUT]

    # VariationalEmbeddingNet: split mu/logvar, reparameterize (training path), KLD.
    mu = out[:, 0:MU_SIZE]
    logvar = out[:, MU_SIZE:EMBED_OUT]
    std = jnp.exp(0.5 * logvar)
    embed = mu + eps_ref[...] * std
    y_ref[...] = jnp.concatenate([out, embed], axis=1)                    # [mu | logvar | embed]

    t = 1.0 + logvar - mu * mu - std * std                                # std*std == exp(logvar)
    kld = jnp.sum(jnp.sum(t, axis=1, keepdims=True), axis=0, keepdims=True)
    kld_ref[...] = kld * (-0.5 / KLD_NORM)


# ---------------------------------- wrapper ----------------------------------
@jax.jit
def variational_embedding_forward(x, eps, wc, chan_ind, w1_eff, w3_eff, prm):
    """VariationalEmbeddingNet.forward (training mode) -> (embed, mu, logvar, kld)."""
    B = x.shape[0]
    vmem = lambda: pl.BlockSpec(memory_space=pltpu.MemorySpace.VMEM)
    # Single grid step: BatchNorm needs whole-batch statistics, so the batch axis must not
    # be tiled.  If B ever grows to ~10^5+ rows (v7x: 64 MiB VMEM), switch to a two-pass
    # cross-tile BN reduction before adding a ("parallel",) batch grid.
    y, kld = pl.pallas_call(
        vae_encoder_kernel,
        out_shape=(
            jax.ShapeDtypeStruct((B, EMBED_OUT + MU_SIZE), jnp.float32),
            jax.ShapeDtypeStruct((1, 1), jnp.float32),
        ),
        in_specs=[vmem() for _ in range(7)],
        out_specs=(vmem(), vmem()),
    )(x, eps, wc, chan_ind, w1_eff, w3_eff, prm)
    mu = y[:, :MU_SIZE]
    logvar = y[:, MU_SIZE:EMBED_OUT]
    embed = y[:, EMBED_OUT:]
    return embed, mu, logvar, kld[0, 0]


# ------------------------- pure-JAX reference (PyTorch transcription) -------------------------
def reference_forward(x, eps, wconv, gamma1, beta1, w1, bias1, gamma2, beta2, w3, bias3):
    B = x.shape[0]
    pad = (CONV_K - 1) // 2
    xp = jnp.pad(x, ((0, 0), (pad, pad)))
    conv = jnp.stack(
        [sum(wconv[c, 0, j] * xp[:, j:j + CONV_LEN] for j in range(CONV_K))
         for c in range(CONV_CHANNELS)], axis=1)                          # (B, C, L)
    mean = jnp.mean(conv, axis=(0, 2), keepdims=True)
    var = jnp.mean((conv - mean) ** 2, axis=(0, 2), keepdims=True)
    h = (conv - mean) / jnp.sqrt(var + BN_EPS)
    h = h * gamma1[None, :, None] + beta1[None, :, None]
    h = jnp.maximum(h, 0.0)
    pooled = jnp.stack(
        [jnp.max(h[:, :, POOL_STRIDE * p: POOL_STRIDE * p + CONV_K], axis=2)
         for p in range(POOL_LEN)], axis=2)                               # (B, C, Lp)
    flat = pooled.reshape(B, -1)                                          # channel-major flatten
    z = jnp.dot(flat, w1.T, precision=lax.Precision.HIGHEST) + bias1
    z = jnp.maximum(z, 0.0)                                               # dropout p=0 -> identity
    m2 = jnp.mean(z, axis=0, keepdims=True)
    v2 = jnp.mean((z - m2) ** 2, axis=0, keepdims=True)
    zbn = (z - m2) / jnp.sqrt(v2 + BN_EPS) * gamma2 + beta2
    out = jnp.dot(zbn, w3.T, precision=lax.Precision.HIGHEST) + bias3
    mu, logvar = out[:, :MU_SIZE], out[:, MU_SIZE:]
    std = jnp.exp(0.5 * logvar)
    embed = mu + eps * std
    kld = -0.5 * jnp.sum(1.0 + logvar - mu ** 2 - jnp.exp(logvar)) / KLD_NORM
    return embed, mu, logvar, kld


# ----------------------------------- main -----------------------------------
if __name__ == "__main__":
    key = jax.random.PRNGKey(0)
    ks = jax.random.split(key, 11)
    B = BATCH

    # Module input and the torch.randn_like noise of the reparameterization trick.
    x = jax.random.normal(ks[0], (B, INPUT_SIZE), jnp.float32)
    eps = jax.random.normal(ks[1], (B, MU_SIZE), jnp.float32)

    # Raw PyTorch-layout parameters.
    wconv = jax.random.normal(ks[2], (CONV_CHANNELS, 1, CONV_K), jnp.float32) / np.sqrt(CONV_K)
    gamma1 = 1.0 + 0.1 * jax.random.normal(ks[3], (CONV_CHANNELS,), jnp.float32)
    beta1 = 0.1 * jax.random.normal(ks[4], (CONV_CHANNELS,), jnp.float32)
    w1 = jax.random.normal(ks[5], (FC_SIZE, FC_IN), jnp.float32) / np.sqrt(FC_IN)
    bias1 = 0.1 * jax.random.normal(ks[6], (FC_SIZE,), jnp.float32)
    gamma2 = 1.0 + 0.1 * jax.random.normal(ks[7], (FC_SIZE,), jnp.float32)
    beta2 = 0.1 * jax.random.normal(ks[8], (FC_SIZE,), jnp.float32)
    w3 = jax.random.normal(ks[9], (EMBED_OUT, FC_SIZE), jnp.float32) / np.sqrt(FC_SIZE)
    bias3 = 0.1 * jax.random.normal(ks[10], (EMBED_OUT,), jnp.float32)

    wc, chan_ind, w1_eff, w3_eff, prm = fold_parameters(
        wconv, gamma1, beta1, w1, bias1, gamma2, beta2, w3, bias3)

    embed, mu, logvar, kld = variational_embedding_forward(
        x, eps, jnp.asarray(wc), jnp.asarray(chan_ind), jnp.asarray(w1_eff),
        jnp.asarray(w3_eff), jnp.asarray(prm))
    jax.block_until_ready((embed, mu, logvar, kld))
    assert embed.shape == (B, MU_SIZE) and mu.shape == (B, MU_SIZE) and logvar.shape == (B, MU_SIZE)

    # Lock the folded kernel against a pure-JAX transcription of the PyTorch forward.
    r_embed, r_mu, r_logvar, r_kld = reference_forward(
        x, eps, wconv, gamma1, beta1, w1, bias1, gamma2, beta2, w3, bias3)
    np.testing.assert_allclose(np.asarray(mu), np.asarray(r_mu), rtol=5e-2, atol=5e-2)
    np.testing.assert_allclose(np.asarray(logvar), np.asarray(r_logvar), rtol=5e-2, atol=5e-2)
    np.testing.assert_allclose(np.asarray(embed), np.asarray(r_embed), rtol=5e-2, atol=5e-2)
    np.testing.assert_allclose(float(kld), float(r_kld), rtol=5e-2, atol=5e-2)

    print("KERNEL_OK")
</pallas_src>

<mosaic_0001>
module attributes {stable_mosaic.version = 11 : i64} {
  func.func @vae_encoder_kernel(%arg0: memref<8x64xf32, #tpu.memory_space<vmem>>, %arg1: memref<8x8xf32, #tpu.memory_space<vmem>>, %arg2: memref<64x256xf32, #tpu.memory_space<vmem>>, %arg3: memref<256x256xf32, #tpu.memory_space<vmem>>, %arg4: memref<252x32xf32, #tpu.memory_space<vmem>>, %arg5: memref<32x16xf32, #tpu.memory_space<vmem>>, %arg6: memref<4x256xf32, #tpu.memory_space<vmem>>, %arg7: memref<8x24xf32, #tpu.memory_space<vmem>>, %arg8: memref<1x1xf32, #tpu.memory_space<vmem>>) attributes {dimension_semantics = [], scalar_prefetch = 0 : i64, scratch_operands = 0 : i64, tpu.core_type = #tpu.core_type<tc>} {
    %c0 = arith.constant 0 : index
    %c0_0 = arith.constant 0 : index
    %0 = vector.load %arg0[%c0, %c0_0] : memref<8x64xf32, #tpu.memory_space<vmem>>, vector<8x64xf32>
    %c0_1 = arith.constant 0 : index
    %c0_2 = arith.constant 0 : index
    %1 = vector.load %arg2[%c0_1, %c0_2] : memref<64x256xf32, #tpu.memory_space<vmem>>, vector<64x256xf32>
    %cst = arith.constant dense<0.000000e+00> : vector<8x256xf32>
    %2 = tpu.matmul %0, %1, %cst {dimension_numbers = #tpu.dot_dimension_numbers<[1], [0], [0], [1], [0, 0, 1, 1], [], []>} : vector<8x64xf32>, vector<64x256xf32>, vector<8x256xf32> -> vector<8x256xf32>
    %cst_3 = arith.constant dense<0.000000e+00> : vector<256xf32>
    %3 = vector.multi_reduction <add>, %2, %cst_3 [0] : vector<8x256xf32> to vector<256xf32>
    %4 = vector.shape_cast %3 : vector<256xf32> to vector<1x256xf32>
    %5 = arith.mulf %2, %2 : vector<8x256xf32>
    %cst_4 = arith.constant dense<0.000000e+00> : vector<256xf32>
    %6 = vector.multi_reduction <add>, %5, %cst_4 [0] : vector<8x256xf32> to vector<256xf32>
    %7 = vector.shape_cast %6 : vector<256xf32> to vector<1x256xf32>
    %c0_5 = arith.constant 0 : index
    %c0_6 = arith.constant 0 : index
    %8 = vector.load %arg3[%c0_5, %c0_6] : memref<256x256xf32, #tpu.memory_space<vmem>>, vector<256x256xf32>
    %cst_7 = arith.constant dense<0.000000e+00> : vector<1x256xf32>
    %9 = tpu.matmul %4, %8, %cst_7 {dimension_numbers = #tpu.dot_dimension_numbers<[1], [0], [0], [1], [0, 0, 1, 1], [], []>} : vector<1x256xf32>, vector<256x256xf32>, vector<1x256xf32> -> vector<1x256xf32>
    %cst_8 = arith.constant 0.001953125 : f32
    %10 = vector.broadcast %cst_8 : f32 to vector<1x256xf32>
    %11 = arith.mulf %9, %10 : vector<1x256xf32>
    %c0_9 = arith.constant 0 : index
    %c0_10 = arith.constant 0 : index
    %12 = vector.load %arg3[%c0_9, %c0_10] : memref<256x256xf32, #tpu.memory_space<vmem>>, vector<256x256xf32>
    %cst_11 = arith.constant dense<0.000000e+00> : vector<1x256xf32>
    %13 = tpu.matmul %7, %12, %cst_11 {dimension_numbers = #tpu.dot_dimension_numbers<[1], [0], [0], [1], [0, 0, 1, 1], [], []>} : vector<1x256xf32>, vector<256x256xf32>, vector<1x256xf32> -> vector<1x256xf32>
    %cst_12 = arith.constant 0.001953125 : f32
    %14 = vector.broadcast %cst_12 : f32 to vector<1x256xf32>
    %15 = arith.mulf %13, %14 : vector<1x256xf32>
    %16 = arith.mulf %11, %11 : vector<1x256xf32>
    %17 = arith.subf %15, %16 : vector<1x256xf32>
    %c0_13 = arith.constant 0 : index
    %c0_14 = arith.constant 0 : index
    %18 = vector.load %arg6[%c0_13, %c0_14] : memref<4x256xf32, #tpu.memory_space<vmem>>, vector<1x256xf32>
    %cst_15 = arith.constant 9.99999974E-6 : f32
    %19 = vector.broadcast %cst_15 : f32 to vector<1x256xf32>
    %20 = arith.addf %17, %19 : vector<1x256xf32>
    %21 = math.rsqrt %20 : vector<1x256xf32>
    %22 = arith.mulf %18, %21 : vector<1x256xf32>
    %c1 = arith.constant 1 : index
    %c0_16 = arith.constant 0 : index
    %23 = vector.load %arg6[%c1, %c0_16] : memref<4x256xf32, #tpu.memory_space<vmem>>, vector<1x256xf32>
    %24 = arith.mulf %11, %22 : vector<1x256xf32>
    %25 = arith.subf %23, %24 : vector<1x256xf32>
    %26 = vector.broadcast %22 : vector<1x256xf32> to vector<8x256xf32>
    %27 = arith.mulf %2, %26 : vector<8x256xf32>
    %28 = vector.broadcast %25 : vector<1x256xf32> to vector<8x256xf32>
    %29 = arith.addf %27, %28 : vector<8x256xf32>
    %cst_17 = arith.constant 0.000000e+00 : f32
    %30 = vector.broadcast %cst_17 : f32 to vector<8x256xf32>
    %31 = arith.maximumf %29, %30 : vector<8x256xf32>
    %32 = vector.extract_strided_slice %31 {offsets = [0, 0], sizes = [8, 252], strides = [1, 1]} : vector<8x256xf32> to vector<8x252xf32>
    %33 = vector.extract_strided_slice %31 {offsets = [0, 1], sizes = [8, 252], strides = [1, 1]} : vector<8x256xf32> to vector<8x252xf32>
    %34 = arith.maximumf %32, %33 : vector<8x252xf32>
    %35 = vector.extract_strided_slice %31 {offsets = [0, 2], sizes = [8, 252], strides = [1, 1]} : vector<8x256xf32> to vector<8x252xf32>
    %36 = arith.maximumf %34, %35 : vector<8x252xf32>
    %37 = vector.extract_strided_slice %31 {offsets = [0, 3], sizes = [8, 252], strides = [1, 1]} : vector<8x256xf32> to vector<8x252xf32>
    %38 = arith.maximumf %36, %37 : vector<8x252xf32>
    %39 = vector.extract_strided_slice %31 {offsets = [0, 4], sizes = [8, 252], strides = [1, 1]} : vector<8x256xf32> to vector<8x252xf32>
    %40 = arith.maximumf %38, %39 : vector<8x252xf32>
    %c0_18 = arith.constant 0 : index
    %c0_19 = arith.constant 0 : index
    %41 = vector.load %arg4[%c0_18, %c0_19] : memref<252x32xf32, #tpu.memory_space<vmem>>, vector<252x32xf32>
    %cst_20 = arith.constant dense<0.000000e+00> : vector<8x32xf32>
    %42 = tpu.matmul %40, %41, %cst_20 {dimension_numbers = #tpu.dot_dimension_numbers<[1], [0], [0], [1], [0, 0, 1, 1], [], []>} : vector<8x252xf32>, vector<252x32xf32>, vector<8x32xf32> -> vector<8x32xf32>
    %c2 = arith.constant 2 : index
    %c0_21 = arith.constant 0 : index
    %43 = vector.load %arg6[%c2, %c0_21] : memref<4x256xf32, #tpu.memory_space<vmem>>, vector<1x32xf32>
    %44 = vector.broadcast %43 : vector<1x32xf32> to vector<8x32xf32>
    %45 = arith.addf %42, %44 : vector<8x32xf32>
    %cst_22 = arith.constant 0.000000e+00 : f32
    %46 = vector.broadcast %cst_22 : f32 to vector<8x32xf32>
    %47 = arith.maximumf %45, %46 : vector<8x32xf32>
    %cst_23 = arith.constant dense<0.000000e+00> : vector<32xf32>
    %48 = vector.multi_reduction <add>, %47, %cst_23 [0] : vector<8x32xf32> to vector<32xf32>
    %49 = vector.shape_cast %48 : vector<32xf32> to vector<1x32xf32>
    %cst_24 = arith.constant 8.000000e+00 : f32
    %50 = vector.broadcast %cst_24 : f32 to vector<1x32xf32>
    %51 = arith.divf %49, %50 : vector<1x32xf32>
    %52 = arith.mulf %47, %47 : vector<8x32xf32>
    %cst_25 = arith.constant dense<0.000000e+00> : vector<32xf32>
    %53 = vector.multi_reduction <add>, %52, %cst_25 [0] : vector<8x32xf32> to vector<32xf32>
    %54 = vector.shape_cast %53 : vector<32xf32> to vector<1x32xf32>
    %cst_26 = arith.constant 8.000000e+00 : f32
    %55 = vector.broadcast %cst_26 : f32 to vector<1x32xf32>
    %56 = arith.divf %54, %55 : vector<1x32xf32>
    %57 = arith.mulf %51, %51 : vector<1x32xf32>
    %58 = arith.subf %56, %57 : vector<1x32xf32>
    %59 = vector.broadcast %51 : vector<1x32xf32> to vector<8x32xf32>
    %60 = arith.subf %47, %59 : vector<8x32xf32>
    %cst_27 = arith.constant 9.99999974E-6 : f32
    %61 = vector.broadcast %cst_27 : f32 to vector<1x32xf32>
    %62 = arith.addf %58, %61 : vector<1x32xf32>
    %63 = math.rsqrt %62 : vector<1x32xf32>
    %64 = vector.broadcast %63 : vector<1x32xf32> to vector<8x32xf32>
    %65 = arith.mulf %60, %64 : vector<8x32xf32>
    %c0_28 = arith.constant 0 : index
    %c0_29 = arith.constant 0 : index
    %66 = vector.load %arg5[%c0_28, %c0_29] : memref<32x16xf32, #tpu.memory_space<vmem>>, vector<32x16xf32>
    %cst_30 = arith.constant dense<0.000000e+00> : vector<8x16xf32>
    %67 = tpu.matmul %65, %66, %cst_30 {dimension_numbers = #tpu.dot_dimension_numbers<[1], [0], [0], [1], [0, 0, 1, 1], [], []>} : vector<8x32xf32>, vector<32x16xf32>, vector<8x16xf32> -> vector<8x16xf32>
    %c3 = arith.constant 3 : index
    %c0_31 = arith.constant 0 : index
    %68 = vector.load %arg6[%c3, %c0_31] : memref<4x256xf32, #tpu.memory_space<vmem>>, vector<1x16xf32>
    %69 = vector.broadcast %68 : vector<1x16xf32> to vector<8x16xf32>
    %70 = arith.addf %67, %69 : vector<8x16xf32>
    %71 = vector.extract_strided_slice %70 {offsets = [0, 0], sizes = [8, 8], strides = [1, 1]} : vector<8x16xf32> to vector<8x8xf32>
    %72 = vector.extract_strided_slice %70 {offsets = [0, 8], sizes = [8, 8], strides = [1, 1]} : vector<8x16xf32> to vector<8x8xf32>
    %cst_32 = arith.constant 5.000000e-01 : f32
    %73 = vector.broadcast %cst_32 : f32 to vector<8x8xf32>
    %74 = arith.mulf %73, %72 : vector<8x8xf32>
    %75 = math.exp %74 : vector<8x8xf32>
    %c0_33 = arith.constant 0 : index
    %c0_34 = arith.constant 0 : index
    %76 = vector.load %arg1[%c0_33, %c0_34] : memref<8x8xf32, #tpu.memory_space<vmem>>, vector<8x8xf32>
    %77 = arith.mulf %76, %75 : vector<8x8xf32>
    %78 = arith.addf %71, %77 : vector<8x8xf32>
    %79 = tpu.concatenate %70, %78 in 1 : vector<8x16xf32>, vector<8x8xf32> -> vector<8x24xf32>
    %c0_35 = arith.constant 0 : index
    %c0_36 = arith.constant 0 : index
    %80 = vector.load %arg7[%c0_35, %c0_36] : memref<8x24xf32, #tpu.memory_space<vmem>>, vector<8x24xf32>
    tpu.vector_store %arg7[%c0_35, %c0_36], %79 {strides = array<i32>} : memref<8x24xf32, #tpu.memory_space<vmem>>, vector<8x24xf32>,
    %cst_37 = arith.constant 1.000000e+00 : f32
    %81 = vector.broadcast %cst_37 : f32 to vector<8x8xf32>
    %82 = arith.addf %81, %72 : vector<8x8xf32>
    %83 = arith.mulf %71, %71 : vector<8x8xf32>
    %84 = arith.subf %82, %83 : vector<8x8xf32>
    %85 = arith.mulf %75, %75 : vector<8x8xf32>
    %86 = arith.subf %84, %85 : vector<8x8xf32>
    %cst_38 = arith.constant dense<0.000000e+00> : vector<8xf32>
    %87 = vector.multi_reduction <add>, %86, %cst_38 [1] : vector<8x8xf32> to vector<8xf32>
    %88 = vector.shape_cast %87 : vector<8xf32> to vector<8x1xf32>
    %cst_39 = arith.constant dense<0.000000e+00> : vector<1xf32>
    %89 = vector.multi_reduction <add>, %88, %cst_39 [0] : vector<8x1xf32> to vector<1xf32>
    %90 = vector.shape_cast %89 : vector<1xf32> to vector<1x1xf32>
    %cst_40 = arith.constant -9.765625E-4 : f32
    %91 = vector.broadcast %cst_40 : f32 to vector<1x1xf32>
    %92 = arith.mulf %90, %91 : vector<1x1xf32>
    %c0_41 = arith.constant 0 : index
    %c0_42 = arith.constant 0 : index
    %93 = vector.load %arg8[%c0_41, %c0_42] : memref<1x1xf32, #tpu.memory_space<vmem>>, vector<1x1xf32>
    tpu.vector_store %arg8[%c0_41, %c0_42], %92 {strides = array<i32>} : memref<1x1xf32, #tpu.memory_space<vmem>>, vector<1x1xf32>,
    return
  }
}

</mosaic_0001>

<llo_original>
// kernel: variational_embedding_forward.1
$region0: #{variational_embedding_forward.1}
  #allocation0 [shape = 'u32[]', space=smem, size = 0x4, offset = 0x4, fixed_abs, tag = 'smem constant byte address 0x4 - core index']
  #allocation1 [shape = 'u32[144,128]{1,0:T(1,128)}', space=vmem, size = 0x12000, scoped, tag = 'internal scratch']
  %s0 = inlined_call_operand.vmem [shape: f32[8,64], index: 0, kind: input, shape index: {}]
  %s1 = inlined_call_operand.vmem [shape: f32[8,8], index: 1, kind: input, shape index: {}]
  %s2 = inlined_call_operand.vmem [shape: f32[64,256], index: 2, kind: input, shape index: {}]
  %s3 = inlined_call_operand.hbm [shape: f32[256,256], index: 3, kind: input, shape index: {}]
  %s4 = inlined_call_operand.vmem [shape: f32[252,32], index: 4, kind: input, shape index: {}]
  %s5 = inlined_call_operand.vmem [shape: f32[32,16], index: 5, kind: input, shape index: {}]
  %s6 = inlined_call_operand.vmem [shape: f32[4,256], index: 6, kind: input, shape index: {}]
  %s7 = inlined_call_operand.vmem [shape: f32[8,24], index: 7, kind: output, shape index: {0}]
  %s8 = inlined_call_operand.hbm [shape: f32[1,1], index: 8, kind: output, shape index: {1}]
  %9 = xla_tuple %s7, %s8
  %s10 = sld [smem:[#allocation0]]
  $region50: #{variational_embedding_forward.1} parent=0
    _
  %s12 = ssub.s32 1, %s10
  %s13 = scalar_select 0, %s12, %s10
  $region1: #{variational_embedding_forward.1} parent=0
    #allocation2 [shape = 'u8[262144]{0}', space=vmem, size = 0x40000, scoped, tag = 'input window, operand 3, single buffered']
    #allocation3 [shape = 's32[1]{0}', space=sflag, size = 0x4, scoped, tag = 'scoped memory for variational_embedding_forward.1']
    #allocation4 [shape = 's32[1]{0}', space=sflag, size = 0x4, scoped, tag = 'scoped memory for variational_embedding_forward.1']
    #allocation5 [shape = 'u8[512]{0}', space=vmem, size = 0x400, scoped, tag = 'output window, operand 1, single buffered']
    %14 = vsyncpa [#allocation3], 0
    %15 = vsyncpa [#allocation4], 0
    // Predicated region
    $region2: #{variational_embedding_forward.1} parent=1 // pred_check
      _
    $region3: #{variational_embedding_forward.1} parent=1 // pred_check_branch
      %17 = sbr.rel (0) target = $region5
    $region4: #{variational_embedding_forward.1} parent=1 // pred_region
      _
    $region5: #{variational_embedding_forward.1} parent=1 // pred_fallthru
      _
    // Predicated region
    $region6: #{variational_embedding_forward.1} parent=1 // pred_check
      _
    $region7: #{variational_embedding_forward.1} parent=1 // pred_check_branch
      %19 = sbr.rel (0) target = $region9
    $region8: #{variational_embedding_forward.1} parent=1 // pred_region
      _
    $region9: #{variational_embedding_forward.1} parent=1 // pred_fallthru
      _
    // Predicated region
    $region10: #{variational_embedding_forward.1} parent=1 // pred_check
      _
    $region11: #{variational_embedding_forward.1} parent=1 // pred_check_branch
      %21 = sbr.rel (0) target = $region13
    $region12: #{variational_embedding_forward.1} parent=1 // pred_region
      _
    $region13: #{variational_embedding_forward.1} parent=1 // pred_fallthru
      _
    // Predicated region
    $region14: #{variational_embedding_forward.1} parent=1 // pred_check
      _
    $region15: #{variational_embedding_forward.1} parent=1 // pred_check_branch
      %23 = sbr.rel (0) target = $region17
    $region16: #{variational_embedding_forward.1} parent=1 // pred_region
      %s25 = ssub.s32 8192, 8192
      %26 = vsyncadd [#allocation3], %s25
      %s27 = sshll.u32 [#allocation2], 4
      %s28 = int_to_ptr.vmem [resolvable:$true] %s27
      %33 = dma.hbm_to_vmem [thread:$0]  %s3, 8192, %s28, [#allocation3], 256, 256, 16
    $region17: #{variational_embedding_forward.1} parent=1 // pred_fallthru
      _
    // Predicated region
    $region18: #{variational_embedding_forward.1} parent=1 // pred_check
      _
    $region19: #{variational_embedding_forward.1} parent=1 // pred_check_branch
      %35 = sbr.rel (0) target = $region21
    $region20: #{variational_embedding_forward.1} parent=1 // pred_region
      _
    $region21: #{variational_embedding_forward.1} parent=1 // pred_fallthru
      _
    // Predicated region
    $region22: #{variational_embedding_forward.1} parent=1 // pred_check
      _
    $region23: #{variational_embedding_forward.1} parent=1 // pred_check_branch
      %37 = sbr.rel (0) target = $region25
    $region24: #{variational_embedding_forward.1} parent=1 // pred_region
      _
    $region25: #{variational_embedding_forward.1} parent=1 // pred_fallthru
      _
    // Predicated region
    $region26: #{variational_embedding_forward.1} parent=1 // pred_check
      _
    $region27: #{variational_embedding_forward.1} parent=1 // pred_check_branch
      %39 = sbr.rel (0) target = $region29
    $region28: #{variational_embedding_forward.1} parent=1 // pred_region
      _
    $region29: #{variational_embedding_forward.1} parent=1 // pred_fallthru
      _
    // Predicated region
    $region30: #{variational_embedding_forward.1} parent=1 // pred_check
      _
    $region31: #{variational_embedding_forward.1} parent=1 // pred_check_branch
      %41 = sbr.rel (0) target = $region33
    $region32: #{variational_embedding_forward.1} parent=1 // pred_region
      %42 = dma.done [#allocation3], 8192
    $region33: #{variational_embedding_forward.1} parent=1 // pred_fallthru
      _
    %v43 = vld [vmem:[%s0] sm:$0xff]
    %v44 = vld [vmem:[%s2] sm:$0xff]
    %v45 = vld [vmem:[%s2 + $0x8] sm:$0xff]
    %v46 = vld [vmem:[%s2 + $0x10] sm:$0xff]
    %v47 = vld [vmem:[%s2 + $0x18] sm:$0xff]
    %v48 = vld [vmem:[%s2 + $0x20] sm:$0xff]
    %v49 = vld [vmem:[%s2 + $0x28] sm:$0xff]
    %v50 = vld [vmem:[%s2 + $0x30] sm:$0xff]
    %v51 = vld [vmem:[%s2 + $0x38] sm:$0xff]
    %v52 = vld [vmem:[%s2 + $0x40] sm:$0xff]
    %v53 = vld [vmem:[%s2 + $0x48] sm:$0xff]
    %v54 = vld [vmem:[%s2 + $0x50] sm:$0xff]
    %v55 = vld [vmem:[%s2 + $0x58] sm:$0xff]
    %v56 = vld [vmem:[%s2 + $0x60] sm:$0xff]
    %v57 = vld [vmem:[%s2 + $0x68] sm:$0xff]
    %v58 = vld [vmem:[%s2 + $0x70] sm:$0xff]
    %v59 = vld [vmem:[%s2 + $0x78] sm:$0xff]
    %vm60 = vcmask 523264
    %v62 = vsel %vm60, %v43, 0
    %64 = vmatprep.subr.mxu0 %v45
    %65 = vmatpush1.msra.mxu0 %v44
    %66 = vmatprep.subr.mxu0 %v47
    %67 = vmatpush1.msra.mxu0 %v46
    %68 = vmatprep.subr.mxu0 %v49
    %69 = vmatpush1.msra.mxu0 %v48
    %70 = vmatprep.subr.mxu0 %v51
    %71 = vmatpush1.msra.mxu0 %v50
    %72 = vmatprep.subr.mxu0 %v53
    %73 = vmatpush1.msra.mxu0 %v52
    %74 = vmatprep.subr.mxu0 %v55
    %75 = vmatpush1.msra.mxu0 %v54
    %76 = vmatprep.subr.mxu0 %v57
    %77 = vmatpush1.msra.mxu0 %v56
    %78 = vmatprep.subr.mxu0 %v59
    %79 = vmatpush1.msra.mxu0 %v58
    %80 = vmatprep.subr.mxu0 0.0
    %81 = vmatpush1.msra.mxu0 0.0
    %82 = vmatprep.subr.mxu0 0.0
    %83 = vmatpush1.msra.mxu0 0.0
    %84 = vmatprep.subr.mxu0 0.0
    %85 = vmatpush1.msra.mxu0 0.0
    %86 = vmatprep.subr.mxu0 0.0
    %87 = vmatpush1.msra.mxu0 0.0
    %88 = vmatprep.subr.mxu0 0.0
    %89 = vmatpush1.msra.mxu0 0.0
    %90 = vmatprep.subr.mxu0 0.0
    %91 = vmatpush1.msra.mxu0 0.0
    %92 = vmatprep.subr.mxu0 0.0
    %93 = vmatpush1.msra.mxu0 0.0
    %94 = vmatprep.subr.mxu0 0.0
    %95 = vmatpush1.msra.mxu0 0.0
    %96 = vmatprep.subr.mxu0 0.0
    %97 = vmatpush1.msra.mxu0 0.0
    %98 = vmatprep.subr.mxu0 0.0
    %99 = vmatpush1.msra.mxu0 0.0
    %100 = vmatprep.subr.mxu0 0.0
    %101 = vmatpush1.msra.mxu0 0.0
    %102 = vmatprep.subr.mxu0 0.0
    %103 = vmatpush1.msra.mxu0 0.0
    %104 = vmatprep.subr.mxu0 0.0
    %105 = vmatpush1.msra.mxu0 0.0
    %106 = vmatprep.subr.mxu0 0.0
    %107 = vmatpush1.msra.mxu0 0.0
    %108 = vmatprep.subr.mxu0 0.0
    %109 = vmatpush1.msra.mxu0 0.0
    %110 = vmatprep.subr.mxu0 0.0
    %111 = vmatpush1.msra.mxu0 0.0
    %112 = vmatprep.subr.mxu0 0.0
    %113 = vmatpush1.msra.mxu0 0.0
    %114 = vmatprep.subr.mxu0 0.0
    %115 = vmatpush1.msra.mxu0 0.0
    %116 = vmatprep.subr.mxu0 0.0
    %117 = vmatpush1.msra.mxu0 0.0
    %118 = vmatprep.subr.mxu0 0.0
    %119 = vmatpush1.msra.mxu0 0.0
    %120 = vmatprep.subr.mxu0 0.0
    %121 = vmatpush1.msra.mxu0 0.0
    %122 = vmatprep.subr.mxu0 0.0
    %123 = vmatpush1.msra.mxu0 0.0
    %124 = vmatprep.subr.mxu0 0.0
    %125 = vmatpush1.msra.mxu0 0.0
    %126 = vmatprep.subr.mxu0 0.0
    %127 = vmatpush1.msra.mxu0 0.0
    %128 = vmatprep.mubr.f32.mxu0 0.0
    %129 = vmatmul.mubr.f32.gmra.mrb[0].mxu0 %v62
    %v130 = vpop.f32.mrb[0].mxu0
    %v131 = vadd.f32 0.0, %v130
    %v132 = vpop.f32.mrb[0].mxu0
    %v133 = vadd.f32 0.0, %v132
    %134 = vdwg.mxu0
    %v135 = vrot.slane %v131, 4
    %v136 = vadd.f32 %v131, %v135
    %v137 = vrot.slane %v136, 2
    %v138 = vadd.f32 %v136, %v137
    %v139 = vrot.slane %v138, 1
    %v140 = vadd.f32 %v138, %v139
    %v141 = vrot.slane %v133, 4
    %v142 = vadd.f32 %v133, %v141
    %v143 = vrot.slane %v142, 2
    %v144 = vadd.f32 %v142, %v143
    %v145 = vrot.slane %v144, 1
    %v146 = vadd.f32 %v144, %v145
    %v147 = vmul.f32 %v131, %v131
    %v148 = vmul.f32 %v133, %v133
    %v149 = vrot.slane %v147, 4
    %v150 = vadd.f32 %v147, %v149
    %v151 = vrot.slane %v150, 2
    %v152 = vadd.f32 %v150, %v151
    %v153 = vrot.slane %v152, 1
    %v154 = vadd.f32 %v152, %v153
    %v155 = vrot.slane %v148, 4
    %v156 = vadd.f32 %v148, %v155
    %v157 = vrot.slane %v156, 2
    %v158 = vadd.f32 %v156, %v157
    %v159 = vrot.slane %v158, 1
    %v160 = vadd.f32 %v158, %v159
    %v161 = vld [vmem:[#allocation2] sm:$0xff]
    %v162 = vld [vmem:[#allocation2 + $0x8] sm:$0xff]
    %v163 = vld [vmem:[#allocation2 + $0x10] sm:$0xff]
    %v164 = vld [vmem:[#allocation2 + $0x18] sm:$0xff]
    %v165 = vld [vmem:[#allocation2 + $0x20] sm:$0xff]
    %v166 = vld [vmem:[#allocation2 + $0x28] sm:$0xff]
    %v167 = vld [vmem:[#allocation2 + $0x30] sm:$0xff]
    %v168 = vld [vmem:[#allocation2 + $0x38] sm:$0xff]
    %v169 = vld [vmem:[#allocation2 + $0x40] sm:$0xff]
    %v170 = vld [vmem:[#allocation2 + $0x48] sm:$0xff]
    %v171 = vld [vmem:[#allocation2 + $0x50] sm:$0xff]
    %v172 = vld [vmem:[#allocation2 + $0x58] sm:$0xff]
    %v173 = vld [vmem:[#allocation2 + $0x60] sm:$0xff]
    %v174 = vld [vmem:[#allocation2 + $0x68] sm:$0xff]
    %v175 = vld [vmem:[#allocation2 + $0x70] sm:$0xff]
    %v176 = vld [vmem:[#allocation2 + $0x78] sm:$0xff]
    %v177 = vld [vmem:[#allocation2 + $0x80] sm:$0xff]
    %v178 = vld [vmem:[#allocation2 + $0x88] sm:$0xff]
    %v179 = vld [vmem:[#allocation2 + $0x90] sm:$0xff]
    %v180 = vld [vmem:[#allocation2 + $0x98] sm:$0xff]
    %v181 = vld [vmem:[#allocation2 + $0xa0] sm:$0xff]
    %v182 = vld [vmem:[#allocation2 + $0xa8] sm:$0xff]
    %v183 = vld [vmem:[#allocation2 + $0xb0] sm:$0xff]
    %v184 = vld [vmem:[#allocation2 + $0xb8] sm:$0xff]
    %v185 = vld [vmem:[#allocation2 + $0xc0] sm:$0xff]
    %v186 = vld [vmem:[#allocation2 + $0xc8] sm:$0xff]
    %v187 = vld [vmem:[#allocation2 + $0xd0] sm:$0xff]
    %v188 = vld [vmem:[#allocation2 + $0xd8] sm:$0xff]
    %v189 = vld [vmem:[#allocation2 + $0xe0] sm:$0xff]
    %v190 = vld [vmem:[#allocation2 + $0xe8] sm:$0xff]
    %v191 = vld [vmem:[#allocation2 + $0xf0] sm:$0xff]
    %v192 = vld [vmem:[#allocation2 + $0xf8] sm:$0xff]
    %v193 = vld [vmem:[#allocation2 + $0x100] sm:$0xff]
    %v194 = vld [vmem:[#allocation2 + $0x108] sm:$0xff]
    %v195 = vld [vmem:[#allocation2 + $0x110] sm:$0xff]
    %v196 = vld [vmem:[#allocation2 + $0x118] sm:$0xff]
    %v197 = vld [vmem:[#allocation2 + $0x120] sm:$0xff]
    %v198 = vld [vmem:[#allocation2 + $0x128] sm:$0xff]
    %v199 = vld [vmem:[#allocation2 + $0x130] sm:$0xff]
    %v200 = vld [vmem:[#allocation2 + $0x138] sm:$0xff]
    %v201 = vld [vmem:[#allocation2 + $0x140] sm:$0xff]
    %v202 = vld [vmem:[#allocation2 + $0x148] sm:$0xff]
    %v203 = vld [vmem:[#allocation2 + $0x150] sm:$0xff]
    %v204 = vld [vmem:[#allocation2 + $0x158] sm:$0xff]
    %v205 = vld [vmem:[#allocation2 + $0x160] sm:$0xff]
    %v206 = vld [vmem:[#allocation2 + $0x168] sm:$0xff]
    %v207 = vld [vmem:[#allocation2 + $0x170] sm:$0xff]
    %v208 = vld [vmem:[#allocation2 + $0x178] sm:$0xff]
    %v209 = vld [vmem:[#allocation2 + $0x180] sm:$0xff]
    %v210 = vld [vmem:[#allocation2 + $0x188] sm:$0xff]
    %v211 = vld [vmem:[#allocation2 + $0x190] sm:$0xff]
    %v212 = vld [vmem:[#allocation2 + $0x198] sm:$0xff]
    %v213 = vld [vmem:[#allocation2 + $0x1a0] sm:$0xff]
    %v214 = vld [vmem:[#allocation2 + $0x1a8] sm:$0xff]
    %v215 = vld [vmem:[#allocation2 + $0x1b0] sm:$0xff]
    %v216 = vld [vmem:[#allocation2 + $0x1b8] sm:$0xff]
    %v217 = vld [vmem:[#allocation2 + $0x1c0] sm:$0xff]
    %v218 = vld [vmem:[#allocation2 + $0x1c8] sm:$0xff]
    %v219 = vld [vmem:[#allocation2 + $0x1d0] sm:$0xff]
    %v220 = vld [vmem:[#allocation2 + $0x1d8] sm:$0xff]
    %v221 = vld [vmem:[#allocation2 + $0x1e0] sm:$0xff]
    %v222 = vld [vmem:[#allocation2 + $0x1e8] sm:$0xff]
    %v223 = vld [vmem:[#allocation2 + $0x1f0] sm:$0xff]
    %v224 = vld [vmem:[#allocation2 + $0x1f8] sm:$0xff]
    %225 = vmatprep.subr.mxu0 %v162
    %226 = vmatpush1.msra.mxu0 %v161
    %227 = vmatprep.subr.mxu0 %v164
    %228 = vmatpush1.msra.mxu0 %v163
    %229 = vmatprep.subr.mxu0 %v166
    %230 = vmatpush1.msra.mxu0 %v165
    %231 = vmatprep.subr.mxu0 %v168
    %232 = vmatpush1.msra.mxu0 %v167
    %233 = vmatprep.subr.mxu0 %v170
    %234 = vmatpush1.msra.mxu0 %v169
    %235 = vmatprep.subr.mxu0 %v172
    %236 = vmatpush1.msra.mxu0 %v171
    %237 = vmatprep.subr.mxu0 %v174
    %238 = vmatpush1.msra.mxu0 %v173
    %239 = vmatprep.subr.mxu0 %v176
    %240 = vmatpush1.msra.mxu0 %v175
    %241 = vmatprep.subr.mxu0 %v178
    %242 = vmatpush1.msra.mxu0 %v177
    %243 = vmatprep.subr.mxu0 %v180
    %244 = vmatpush1.msra.mxu0 %v179
    %245 = vmatprep.subr.mxu0 %v182
    %246 = vmatpush1.msra.mxu0 %v181
    %247 = vmatprep.subr.mxu0 %v184
    %248 = vmatpush1.msra.mxu0 %v183
    %249 = vmatprep.subr.mxu0 %v186
    %250 = vmatpush1.msra.mxu0 %v185
    %251 = vmatprep.subr.mxu0 %v188
    %252 = vmatpush1.msra.mxu0 %v187
    %253 = vmatprep.subr.mxu0 %v190
    %254 = vmatpush1.msra.mxu0 %v189
    %255 = vmatprep.subr.mxu0 %v192
    %256 = vmatpush1.msra.mxu0 %v191
    %257 = vmatprep.subr.mxu0 %v194
    %258 = vmatpush1.msra.mxu0 %v193
    %259 = vmatprep.subr.mxu0 %v196
    %260 = vmatpush1.msra.mxu0 %v195
    %261 = vmatprep.subr.mxu0 %v198
    %262 = vmatpush1.msra.mxu0 %v197
    %263 = vmatprep.subr.mxu0 %v200
    %264 = vmatpush1.msra.mxu0 %v199
    %265 = vmatprep.subr.mxu0 %v202
    %266 = vmatpush1.msra.mxu0 %v201
    %267 = vmatprep.subr.mxu0 %v204
    %268 = vmatpush1.msra.mxu0 %v203
    %269 = vmatprep.subr.mxu0 %v206
    %270 = vmatpush1.msra.mxu0 %v205
    %271 = vmatprep.subr.mxu0 %v208
    %272 = vmatpush1.msra.mxu0 %v207
    %273 = vmatprep.subr.mxu0 %v210
    %274 = vmatpush1.msra.mxu0 %v209
    %275 = vmatprep.subr.mxu0 %v212
    %276 = vmatpush1.msra.mxu0 %v211
    %277 = vmatprep.subr.mxu0 %v214
    %278 = vmatpush1.msra.mxu0 %v213
    %279 = vmatprep.subr.mxu0 %v216
    %280 = vmatpush1.msra.mxu0 %v215
    %281 = vmatprep.subr.mxu0 %v218
    %282 = vmatpush1.msra.mxu0 %v217
    %283 = vmatprep.subr.mxu0 %v220
    %284 = vmatpush1.msra.mxu0 %v219
    %285 = vmatprep.subr.mxu0 %v222
    %286 = vmatpush1.msra.mxu0 %v221
    %287 = vmatprep.subr.mxu0 %v224
    %288 = vmatpush1.msra.mxu0 %v223
    %289 = vmatprep.mubr.f32.mxu0 %v146
    %290 = vmatmul.mubr.f32.gmra.mrb[0].mxu0 %v140
    %v291 = vpop.f32.mrb[0].mxu0
    %v292 = vadd.f32 0.0, %v291
    %v293 = vpop.f32.mrb[0].mxu0
    %v294 = vadd.f32 0.0, %v293
    %295 = vdwg.mxu0
    %v296 = vmul.f32 %v292, 0.001953125
    %v297 = vmul.f32 %v294, 0.001953125
    %298 = vmatprep.subr.mxu0 %v162
    %299 = vmatpush1.msra.mxu0 %v161
    %300 = vmatprep.subr.mxu0 %v164
    %301 = vmatpush1.msra.mxu0 %v163
    %302 = vmatprep.subr.mxu0 %v166
    %303 = vmatpush1.msra.mxu0 %v165
    %304 = vmatprep.subr.mxu0 %v168
    %305 = vmatpush1.msra.mxu0 %v167
    %306 = vmatprep.subr.mxu0 %v170
    %307 = vmatpush1.msra.mxu0 %v169
    %308 = vmatprep.subr.mxu0 %v172
    %309 = vmatpush1.msra.mxu0 %v171
    %310 = vmatprep.subr.mxu0 %v174
    %311 = vmatpush1.msra.mxu0 %v173
    %312 = vmatprep.subr.mxu0 %v176
    %313 = vmatpush1.msra.mxu0 %v175
    %314 = vmatprep.subr.mxu0 %v178
    %315 = vmatpush1.msra.mxu0 %v177
    %316 = vmatprep.subr.mxu0 %v180
    %317 = vmatpush1.msra.mxu0 %v179
    %318 = vmatprep.subr.mxu0 %v182
    %319 = vmatpush1.msra.mxu0 %v181
    %320 = vmatprep.subr.mxu0 %v184
    %321 = vmatpush1.msra.mxu0 %v183
    %322 = vmatprep.subr.mxu0 %v186
    %323 = vmatpush1.msra.mxu0 %v185
    %324 = vmatprep.subr.mxu0 %v188
    %325 = vmatpush1.msra.mxu0 %v187
    %326 = vmatprep.subr.mxu0 %v190
    %327 = vmatpush1.msra.mxu0 %v189
    %328 = vmatprep.subr.mxu0 %v192
    %329 = vmatpush1.msra.mxu0 %v191
    %330 = vmatprep.subr.mxu0 %v194
    %331 = vmatpush1.msra.mxu0 %v193
    %332 = vmatprep.subr.mxu0 %v196
    %333 = vmatpush1.msra.mxu0 %v195
    %334 = vmatprep.subr.mxu0 %v198
    %335 = vmatpush1.msra.mxu0 %v197
    %336 = vmatprep.subr.mxu0 %v200
    %337 = vmatpush1.msra.mxu0 %v199
    %338 = vmatprep.subr.mxu0 %v202
    %339 = vmatpush1.msra.mxu0 %v201
    %340 = vmatprep.subr.mxu0 %v204
    %341 = vmatpush1.msra.mxu0 %v203
    %342 = vmatprep.subr.mxu0 %v206
    %343 = vmatpush1.msra.mxu0 %v205
    %344 = vmatprep.subr.mxu0 %v208
    %345 = vmatpush1.msra.mxu0 %v207
    %346 = vmatprep.subr.mxu0 %v210
    %347 = vmatpush1.msra.mxu0 %v209
    %348 = vmatprep.subr.mxu0 %v212
    %349 = vmatpush1.msra.mxu0 %v211
    %350 = vmatprep.subr.mxu0 %v214
    %351 = vmatpush1.msra.mxu0 %v213
    %352 = vmatprep.subr.mxu0 %v216
    %353 = vmatpush1.msra.mxu0 %v215
    %354 = vmatprep.subr.mxu0 %v218
    %355 = vmatpush1.msra.mxu0 %v217
    %356 = vmatprep.subr.mxu0 %v220
    %357 = vmatpush1.msra.mxu0 %v219
    %358 = vmatprep.subr.mxu0 %v222
    %359 = vmatpush1.msra.mxu0 %v221
    %360 = vmatprep.subr.mxu0 %v224
    %361 = vmatpush1.msra.mxu0 %v223
    %362 = vmatprep.mubr.f32.mxu0 %v160
    %363 = vmatmul.mubr.f32.gmra.mrb[0].mxu0 %v154
    %v364 = vpop.f32.mrb[0].mxu0
    %v365 = vadd.f32 0.0, %v364
    %v366 = vpop.f32.mrb[0].mxu0
    %v367 = vadd.f32 0.0, %v366
    %368 = vdwg.mxu0
    %v369 = vmul.f32 %v365, 0.001953125
    %v370 = vmul.f32 %v367, 0.001953125
    %v371 = vmul.f32 %v296, %v296
    %v372 = vmul.f32 %v297, %v297
    %v373 = vsub.f32 %v369, %v371
    %v374 = vsub.f32 %v370, %v372
    %v375 = vld [vmem:[%s6] ss:$4 sm:$0x3]
    %v376 = vadd.f32 %v373, 1e-05
    %v377 = vadd.f32 %v374, 1e-05
    %v378 = vrsqrt.pop %v376
    %v379 = vrsqrt.pop %v377
    %v382 = vcombine.low %v378, %v379
    %v384 = vunpack.c.l.s4 1966171168
    %v385 = vunpack.c.0.s8 %v384
    %v386 = vlaneseq
    %v387 = vshrl.u32 %v386, 7
    %v388 = vsub.s32 %v385, %v387
    %v389 = vrot.slane %v382, %v388
    %v391 = vunpack.c.l.s4 1966171168
    %v392 = vunpack.c.0.s8 %v391
    %v393 = vlaneseq
    %v394 = vshrl.u32 %v393, 7
    %v395 = vsub.s32 %v392, %v394
    %v396 = vrot.slane %v389, %v395
    %v398 = vmul.f32 %v375, %v396
    %s399 = scalar_lea.vmem %s6, 1
    %v400 = vld [vmem:[%s399] ss:$4 sm:$0x3]
    %v402 = vlaneseq
    %v403 = vshrl.u32 %v402, 7
    %v404 = vsub.s32 0, %v403
    %v405 = vrot.slane %v398, %v404
    %v406 = vlaneseq
    %v407 = vshrl.u32 %v406, 7
    %v408 = vsub.s32 1, %v407
    %v409 = vrot.slane %v398, %v408
    %v412 = vmul.f32 %v296, %v405
    %v413 = vmul.f32 %v297, %v409
    %v416 = vcombine.low %v412, %v413
    %v418 = vunpack.c.l.s4 1966171168
    %v419 = vunpack.c.0.s8 %v418
    %v420 = vlaneseq
    %v421 = vshrl.u32 %v420, 7
    %v422 = vsub.s32 %v419, %v421
    %v423 = vrot.slane %v416, %v422
    %v425 = vunpack.c.l.s4 1966171168
    %v426 = vunpack.c.0.s8 %v425
    %v427 = vlaneseq
    %v428 = vshrl.u32 %v427, 7
    %v429 = vsub.s32 %v426, %v428
    %v430 = vrot.slane %v423, %v429
    %v432 = vsub.f32 %v400, %v430
    %v433 = vmul.f32 %v131, %v405
    %v434 = vmul.f32 %v133, %v409
    %v436 = vlaneseq
    %v437 = vshrl.u32 %v436, 7
    %v438 = vsub.s32 0, %v437
    %v439 = vrot.slane %v432, %v438
    %v440 = vlaneseq
    %v441 = vshrl.u32 %v440, 7
    %v442 = vsub.s32 1, %v441
    %v443 = vrot.slane %v432, %v442
    %v446 = vadd.f32 %v433, %v439
    %v447 = vadd.f32 %v434, %v443
    %v448 = vmax.f32 %v446, 0.0
    %v449 = vmax.f32 %v447, 0.0
    %452 = vrot.lane.b32.xlu0 %v448, 127
    %v453 = vpop.permute.xlu0 %452
    %454 = vrot.lane.b32.xlu0 %v449, 127
    %v455 = vpop.permute.xlu0 %454
    %vm456 = vcmask 1039360
    %v457 = vsel %vm456, %v453, %v455
    %v460 = vmax.f32 %v448, %v457
    %v461 = vmax.f32 %v449, %v455
    %462 = vrot.lane.b32.xlu0 %v448, 126
    %v463 = vpop.permute.xlu0 %462
    %464 = vrot.lane.b32.xlu0 %v449, 126
    %v465 = vpop.permute.xlu0 %464
    %vm466 = vcmask 1031168
    %v467 = vsel %vm466, %v463, %v465
    %v470 = vmax.f32 %v460, %v467
    %v471 = vmax.f32 %v461, %v465
    %472 = vrot.lane.b32.xlu0 %v448, 125
    %v473 = vpop.permute.xlu0 %472
    %474 = vrot.lane.b32.xlu0 %v449, 125
    %v475 = vpop.permute.xlu0 %474
    %vm476 = vcmask 1022976
    %v477 = vsel %vm476, %v473, %v475
    %v480 = vmax.f32 %v470, %v477
    %v481 = vmax.f32 %v471, %v475
    %482 = vrot.lane.b32.xlu0 %v448, 124
    %v483 = vpop.permute.xlu0 %482
    %484 = vrot.lane.b32.xlu0 %v449, 124
    %v485 = vpop.permute.xlu0 %484
    %vm486 = vcmask 1014784
    %v487 = vsel %vm486, %v483, %v485
    %v490 = vmax.f32 %v480, %v487
    %v491 = vmax.f32 %v481, %v485
    %v492 = vld [vmem:[%s4] sm:$0xff]
    %v493 = vld [vmem:[%s4 + $0x8] sm:$0xff]
    %v494 = vld [vmem:[%s4 + $0x10] sm:$0xff]
    %v495 = vld [vmem:[%s4 + $0x18] sm:$0xff]
    %v496 = vld [vmem:[%s4 + $0x20] sm:$0xff]
    %v497 = vld [vmem:[%s4 + $0x28] sm:$0xff]
    %v498 = vld [vmem:[%s4 + $0x30] sm:$0xff]
    %v499 = vld [vmem:[%s4 + $0x38] sm:$0xff]
    %v500 = vld [vmem:[%s4 + $0x40] sm:$0xff]
    %v501 = vld [vmem:[%s4 + $0x48] sm:$0xff]
    %v502 = vld [vmem:[%s4 + $0x50] sm:$0xff]
    %v503 = vld [vmem:[%s4 + $0x58] sm:$0xff]
    %v504 = vld [vmem:[%s4 + $0x60] sm:$0xff]
    %v505 = vld [vmem:[%s4 + $0x68] sm:$0xff]
    %v506 = vld [vmem:[%s4 + $0x70] sm:$0xff]
    %v507 = vld [vmem:[%s4 + $0x78] sm:$0xff]
    %v508 = vld [vmem:[%s4 + $0x80] sm:$0xff]
    %v509 = vld [vmem:[%s4 + $0x88] sm:$0xff]
    %v510 = vld [vmem:[%s4 + $0x90] sm:$0xff]
    %v511 = vld [vmem:[%s4 + $0x98] sm:$0xff]
    %v512 = vld [vmem:[%s4 + $0xa0] sm:$0xff]
    %v513 = vld [vmem:[%s4 + $0xa8] sm:$0xff]
    %v514 = vld [vmem:[%s4 + $0xb0] sm:$0xff]
    %v515 = vld [vmem:[%s4 + $0xb8] sm:$0xff]
    %v516 = vld [vmem:[%s4 + $0xc0] sm:$0xff]
    %v517 = vld [vmem:[%s4 + $0xc8] sm:$0xff]
    %v518 = vld [vmem:[%s4 + $0xd0] sm:$0xff]
    %v519 = vld [vmem:[%s4 + $0xd8] sm:$0xff]
    %v520 = vld [vmem:[%s4 + $0xe0] sm:$0xff]
    %v521 = vld [vmem:[%s4 + $0xe8] sm:$0xff]
    %v522 = vld [vmem:[%s4 + $0xf0] sm:$0xff]
    %v523 = vld [vmem:[%s4 + $0xf8] sm:$0xf]
    %v524 = vld [vmem:[%s6 + $0x2] sm:$0x1]
    %v525 = vlaneseq
    %v526 = vshrl.u32 %v525, 7
    %v527 = vsub.s32 0, %v526
    %v528 = vrot.slane %v524, %v527
    %v530 = vsel %vm486, %v491, 0
    %vm532 = vcmask 1043456
    %v534 = vsel %vm532, %v523, 0
    %536 = vmatprep.subr.mxu0 0.0
    %537 = vmatpush1.msra.mxu0 %v492
    %538 = vmatprep.subr.mxu0 0.0
    %539 = vmatpush1.msra.mxu0 %v493
    %540 = vmatprep.subr.mxu0 0.0
    %541 = vmatpush1.msra.mxu0 %v494
    %542 = vmatprep.subr.mxu0 0.0
    %543 = vmatpush1.msra.mxu0 %v495
    %544 = vmatprep.subr.mxu0 0.0
    %545 = vmatpush1.msra.mxu0 %v496
    %546 = vmatprep.subr.mxu0 0.0
    %547 = vmatpush1.msra.mxu0 %v497
    %548 = vmatprep.subr.mxu0 0.0
    %549 = vmatpush1.msra.mxu0 %v498
    %550 = vmatprep.subr.mxu0 0.0
    %551 = vmatpush1.msra.mxu0 %v499
    %552 = vmatprep.subr.mxu0 0.0
    %553 = vmatpush1.msra.mxu0 %v500
    %554 = vmatprep.subr.mxu0 0.0
    %555 = vmatpush1.msra.mxu0 %v501
    %556 = vmatprep.subr.mxu0 0.0
    %557 = vmatpush1.msra.mxu0 %v502
    %558 = vmatprep.subr.mxu0 0.0
    %559 = vmatpush1.msra.mxu0 %v503
    %560 = vmatprep.subr.mxu0 0.0
    %561 = vmatpush1.msra.mxu0 %v504
    %562 = vmatprep.subr.mxu0 0.0
    %563 = vmatpush1.msra.mxu0 %v505
    %564 = vmatprep.subr.mxu0 0.0
    %565 = vmatpush1.msra.mxu0 %v506
    %566 = vmatprep.subr.mxu0 0.0
    %567 = vmatpush1.msra.mxu0 %v507
    %568 = vmatprep.subr.mxu0 0.0
    %569 = vmatpush1.msra.mxu0 %v508
    %570 = vmatprep.subr.mxu0 0.0
    %571 = vmatpush1.msra.mxu0 %v509
    %572 = vmatprep.subr.mxu0 0.0
    %573 = vmatpush1.msra.mxu0 %v510
    %574 = vmatprep.subr.mxu0 0.0
    %575 = vmatpush1.msra.mxu0 %v511
    %576 = vmatprep.subr.mxu0 0.0
    %577 = vmatpush1.msra.mxu0 %v512
    %578 = vmatprep.subr.mxu0 0.0
    %579 = vmatpush1.msra.mxu0 %v513
    %580 = vmatprep.subr.mxu0 0.0
    %581 = vmatpush1.msra.mxu0 %v514
    %582 = vmatprep.subr.mxu0 0.0
    %583 = vmatpush1.msra.mxu0 %v515
    %584 = vmatprep.subr.mxu0 0.0
    %585 = vmatpush1.msra.mxu0 %v516
    %586 = vmatprep.subr.mxu0 0.0
    %587 = vmatpush1.msra.mxu0 %v517
    %588 = vmatprep.subr.mxu0 0.0
    %589 = vmatpush1.msra.mxu0 %v518
    %590 = vmatprep.subr.mxu0 0.0
    %591 = vmatpush1.msra.mxu0 %v519
    %592 = vmatprep.subr.mxu0 0.0
    %593 = vmatpush1.msra.mxu0 %v520
    %594 = vmatprep.subr.mxu0 0.0
    %595 = vmatpush1.msra.mxu0 %v521
    %596 = vmatprep.subr.mxu0 0.0
    %597 = vmatpush1.msra.mxu0 %v522
    %598 = vmatprep.subr.mxu0 0.0
    %599 = vmatpush1.msra.mxu0 %v534
    %600 = vmatprep.mubr.f32.mxu0 %v530
    %601 = vmatmul.mubr.f32.gmra.mrb[0].mxu0 %v490
    %v602 = vpop.f32.mrb[0].mxu0
    %v603 = vadd.f32 %v528, %v602
    %v604 = vpop.f32.mrb[0].mxu0
    %605 = vdwg.mxu0
    %v606 = vmax.f32 %v603, 0.0
    %vm607 = vcmask 261120
    %v608 = vsel %vm607, %v606, 0.0
    %v609 = vrot.slane %v608, 4
    %v610 = vadd.f32 %v608, %v609
    %v611 = vrot.slane %v610, 2
    %v612 = vadd.f32 %v610, %v611
    %v613 = vrot.slane %v612, 1
    %v614 = vadd.f32 %v612, %v613
    %v615 = vrcp.pop 8.0
    %v616 = vmul.f32 %v614, %v615
    %v617 = vmul.f32 %v606, %v606
    %v618 = vsel %vm607, %v617, 0.0
    %v619 = vrot.slane %v618, 4
    %v620 = vadd.f32 %v618, %v619
    %v621 = vrot.slane %v620, 2
    %v622 = vadd.f32 %v620, %v621
    %v623 = vrot.slane %v622, 1
    %v624 = vadd.f32 %v622, %v623
    %v625 = vmul.f32 %v624, %v615
    %v626 = vmul.f32 %v616, %v616
    %v627 = vsub.f32 %v625, %v626
    %v628 = vsub.f32 %v606, %v616
    %v629 = vadd.f32 %v627, 1e-05
    %v630 = vrsqrt.pop %v629
    %v631 = vmul.f32 %v628, %v630
    %v632 = vld [vmem:[%s5] sm:$0xff]
    %v633 = vld [vmem:[%s5 + $0x8] sm:$0xff]
    %v634 = vld [vmem:[%s5 + $0x10] sm:$0xff]
    %v635 = vld [vmem:[%s5 + $0x18] sm:$0xff]
    %v636 = vld [vmem:[%s6 + $0x3] sm:$0x1]
    %v637 = vlaneseq
    %v638 = vshrl.u32 %v637, 7
    %v639 = vsub.s32 0, %v638
    %v640 = vrot.slane %v636, %v639
    %v642 = vsel %vm607, %v631, 0
    %644 = vmatprep.subr.mxu0 0.0
    %645 = vmatpush1.msra.mxu0 %v632
    %646 = vmatprep.subr.mxu0 0.0
    %647 = vmatpush1.msra.mxu0 %v633
    %648 = vmatprep.subr.mxu0 0.0
    %649 = vmatpush1.msra.mxu0 %v634
    %650 = vmatprep.subr.mxu0 0.0
    %651 = vmatpush1.msra.mxu0 %v635
    %652 = vmatprep.subr.mxu0 0.0
    %653 = vmatpush1.msra.mxu0 0.0
    %654 = vmatprep.subr.mxu0 0.0
    %655 = vmatpush1.msra.mxu0 0.0
    %656 = vmatprep.subr.mxu0 0.0
    %657 = vmatpush1.msra.mxu0 0.0
    %658 = vmatprep.subr.mxu0 0.0
    %659 = vmatpush1.msra.mxu0 0.0
    %660 = vmatprep.subr.mxu0 0.0
    %661 = vmatpush1.msra.mxu0 0.0
    %662 = vmatprep.subr.mxu0 0.0
    %663 = vmatpush1.msra.mxu0 0.0
    %664 = vmatprep.subr.mxu0 0.0
    %665 = vmatpush1.msra.mxu0 0.0
    %666 = vmatprep.subr.mxu0 0.0
    %667 = vmatpush1.msra.mxu0 0.0
    %668 = vmatprep.subr.mxu0 0.0
    %669 = vmatpush1.msra.mxu0 0.0
    %670 = vmatprep.subr.mxu0 0.0
    %671 = vmatpush1.msra.mxu0 0.0
    %672 = vmatprep.subr.mxu0 0.0
    %673 = vmatpush1.msra.mxu0 0.0
    %674 = vmatprep.subr.mxu0 0.0
    %675 = vmatpush1.msra.mxu0 0.0
    %676 = vmatprep.subr.mxu0 0.0
    %677 = vmatpush1.msra.mxu0 0.0
    %678 = vmatprep.subr.mxu0 0.0
    %679 = vmatpush1.msra.mxu0 0.0
    %680 = vmatprep.subr.mxu0 0.0
    %681 = vmatpush1.msra.mxu0 0.0
    %682 = vmatprep.subr.mxu0 0.0
    %683 = vmatpush1.msra.mxu0 0.0
    %684 = vmatprep.subr.mxu0 0.0
    %685 = vmatpush1.msra.mxu0 0.0
    %686 = vmatprep.subr.mxu0 0.0
    %687 = vmatpush1.msra.mxu0 0.0
    %688 = vmatprep.subr.mxu0 0.0
    %689 = vmatpush1.msra.mxu0 0.0
    %690 = vmatprep.subr.mxu0 0.0
    %691 = vmatpush1.msra.mxu0 0.0
    %692 = vmatprep.subr.mxu0 0.0
    %693 = vmatpush1.msra.mxu0 0.0
    %694 = vmatprep.subr.mxu0 0.0
    %695 = vmatpush1.msra.mxu0 0.0
    %696 = vmatprep.subr.mxu0 0.0
    %697 = vmatpush1.msra.mxu0 0.0
    %698 = vmatprep.subr.mxu0 0.0
    %699 = vmatpush1.msra.mxu0 0.0
    %700 = vmatprep.subr.mxu0 0.0
    %701 = vmatpush1.msra.mxu0 0.0
    %702 = vmatprep.subr.mxu0 0.0
    %703 = vmatpush1.msra.mxu0 0.0
    %704 = vmatprep.subr.mxu0 0.0
    %705 = vmatpush1.msra.mxu0 0.0
    %706 = vmatprep.subr.mxu0 0.0
    %707 = vmatpush1.msra.mxu0 0.0
    %708 = vmatprep.mubr.f32.mxu0 0.0
    %709 = vmatmul.mubr.f32.gmra.mrb[0].mxu0 %v642
    %v710 = vpop.f32.mrb[0].mxu0
    %v711 = vadd.f32 %v640, %v710
    %v712 = vpop.f32.mrb[0].mxu0
    %713 = vdwg.mxu0
    %v714 = vmul.f32 %v711, 0.5
    %v715 = vmul.f32 %v714, 1.442695
    %v716 = vpow.pop %v715
    %v717 = vld [vmem:[%s1] sm:$0xff]
    %719 = vrot.lane.b32.xlu0 %v716, 120
    %v720 = vpop.permute.xlu0 %719
    %v722 = vmul.f32 %v717, %v720
    %v723 = vadd.f32 %v711, %v722
    %725 = vrot.lane.b32.xlu0 %v723, 16
    %v726 = vpop.permute.xlu0 %725
    %vm728 = vcmask 130048
    %v729 = vsel %vm728, %v711, %v726
    %vm730 = vcmask 195584
    %731 = vst.msk [vmem:[%s7] sm:$0xff] %vm730, %v729
    %v732 = vadd.f32 %v711, 1.0
    %v733 = vmul.f32 %v711, %v711
    %735 = vrot.lane.b32.xlu0 %v733, 8
    %v736 = vpop.permute.xlu0 %735
    %v738 = vsub.f32 %v732, %v736
    %v739 = vmul.f32 %v716, %v716
    %v740 = vsub.f32 %v738, %v739
    %742 = vrot.lane.b32.xlu0 %v740, 120
    %v743 = vpop.permute.xlu0 %742
    %vm745 = vcmask 64512
    %v746 = vsel %vm745, %v743, 0.0
    %747 = vadd.xlane.f32.xlu0 %v746
    %v748 = vpop.xlane.xlu0 %747
    %v749 = vrot.slane %v748, 4
    %v750 = vadd.f32 %v748, %v749
    %v751 = vrot.slane %v750, 2
    %v752 = vadd.f32 %v750, %v751
    %v753 = vrot.slane %v752, 1
    %v754 = vadd.f32 %v752, %v753
    %v755 = vmul.f32 %v754, -0.0009765625
    %vm756 = vcmask 0
    %757 = vst.msk [vmem:[#allocation5] sm:$0x1] %vm756, %v755
    // Predicated region
    $region34: #{variational_embedding_forward.1} parent=1 // pred_check
      _
    $region35: #{variational_embedding_forward.1} parent=1 // pred_check_branch
      %759 = sbr.rel (0) target = $region37
    $region36: #{variational_embedding_forward.1} parent=1 // pred_region
      _
    $region37: #{variational_embedding_forward.1} parent=1 // pred_fallthru
      _
    // Predicated region
    $region38: #{variational_embedding_forward.1} parent=1 // pred_check
      _
    $region39: #{variational_embedding_forward.1} parent=1 // pred_check_branch
      %761 = sbr.rel (0) target = $region41
    $region40: #{variational_embedding_forward.1} parent=1 // pred_region
      %s763 = ssub.s32 16, 16
      %764 = vsyncadd [#allocation4], %s763
      %s766 = sshll.u32 [#allocation5], 4
      %s767 = int_to_ptr.vmem [resolvable:$true] %s766
      %769 = dma.vmem_to_hbm [thread:$0]  %s767, 16, %s8, [#allocation4]
    $region41: #{variational_embedding_forward.1} parent=1 // pred_fallthru
      _
    // Predicated region
    $region42: #{variational_embedding_forward.1} parent=1 // pred_check
      _
    $region43: #{variational_embedding_forward.1} parent=1 // pred_check_branch
      %771 = sbr.rel (0) target = $region45
    $region44: #{variational_embedding_forward.1} parent=1 // pred_region
      _
    $region45: #{variational_embedding_forward.1} parent=1 // pred_fallthru
      _
    // Predicated region
    $region46: #{variational_embedding_forward.1} parent=1 // pred_check
      _
    $region47: #{variational_embedding_forward.1} parent=1 // pred_check_branch
      %773 = sbr.rel (0) target = $region49
    $region48: #{variational_embedding_forward.1} parent=1 // pred_region
      %774 = dma.done [#allocation4], 16
    $region49: #{variational_embedding_forward.1} parent=1 // pred_fallthru
      _
    %775 = vsyncpa [#allocation3], 1
    %776 = vsyncpa [#allocation4], 1

</llo_original>
